<compile_context>
chip_gen: v7x
topology: tpu7x:2x2x1
jax: 0.10.0
libtpu: 0.0.40
codegen_flags: <defaults>
</compile_context>

<pallas_src>
import jax
import jax.numpy as jnp
from jax.experimental import pallas as pl
from jax.experimental.pallas import tpu as pltpu

N_PARAMS = 10
DIM = 10  # logical feature dim from the PyTorch module (10x10 params)


def _apply_kernel(m_ref, x_ref, o_ref):
    """m_ref: (10, 10) pre-folded weight chain M (same block every grid step).
    x_ref / o_ref: (10, tile_n) f32 column tile of the activation.
    Exactly one MXU op touches the activation tile."""
    o_ref[...] = jnp.dot(m_ref[...], x_ref[...],
                         preferred_element_type=jnp.float32)


def _fold_params(params):
    """Fold the batch-independent weight chain once, in the wrapper.

    PyTorch loop:  x = params[i//2] @ x + params[i] @ x
    Fold:          C_i = params[i//2] + params[i]
                   M   = C_9 @ C_8 @ ... @ C_0
    so the per-activation work becomes a single matmul x -> M @ x.
    (FP reassociation of the original computation — accepted approximation.)
    """
    hi = jax.lax.Precision.HIGHEST
    params = params.astype(jnp.float32)
    m = params[0 // 2] + params[0]                      # C_0
    for i in range(1, N_PARAMS):
        c = params[i // 2] + params[i]                  # C_i
        m = jnp.dot(c, m, precision=hi)                 # M <- C_i @ M
    return m


def _round_up(a, b):
    return ((a + b - 1) // b) * b


def parameter_module_forward(params, x, *, tile_n=16384):
    """params: (10, 10, 10) f32, x: (10, N) f32 -> (10, N) f32."""
    dim, n = x.shape
    assert params.shape == (N_PARAMS, DIM, DIM)
    assert dim == DIM

    # Batch-independent weight pre-reduction (done once, outside the kernel).
    m = _fold_params(params)

    # Lane-aligned column tiling of the UNPADDED activation.
    n_lanes = _round_up(n, 128)
    tile_n = max(128, min(int(tile_n), n_lanes))
    # v7x megacore: if there's enough work but we'd end up with a single tile,
    # split into two so the "parallel" axis can use both TensorCores.
    if tile_n >= n_lanes and n_lanes >= 256:
        tile_n = _round_up(pl.cdiv(n, 2), 128)
    tile_n = _round_up(tile_n, 128)
    grid_n = pl.cdiv(n, tile_n)

    out = pl.pallas_call(
        _apply_kernel,
        out_shape=jax.ShapeDtypeStruct((DIM, n), jnp.float32),
        grid_spec=pltpu.PrefetchScalarGridSpec(
            num_scalar_prefetch=0,
            grid=(grid_n,),
            in_specs=[
                # Folded weight M: same (full-extent) block every grid step.
                pl.BlockSpec((DIM, DIM), lambda j: (0, 0)),
                # Activation: one lane-dense column tile per grid step;
                # rows use the full 10-row extent (no row padding).
                pl.BlockSpec((DIM, tile_n), lambda j: (0, j)),
            ],
            out_specs=pl.BlockSpec((DIM, tile_n), lambda j: (0, j)),
        ),
        compiler_params=pltpu.CompilerParams(
            # Column tiles are independent -> shard across TensorCores (v7x).
            dimension_semantics=("parallel",),
        ),
    )(m, x.astype(jnp.float32))
    return out


def _reference_forward(params, x):
    """Pure-JAX reference mirroring the PyTorch loop exactly (no fold)."""
    hi = jax.lax.Precision.HIGHEST
    for i in range(N_PARAMS):
        x = (jnp.dot(params[i // 2], x, precision=hi)
             + jnp.dot(params[i], x, precision=hi))
    return x


if __name__ == "__main__":
    key = jax.random.PRNGKey(0)

    # Deterministic parameter init, matching nn.Parameter(torch.ones(10, 10)).
    params = jnp.ones((N_PARAMS, DIM, DIM), dtype=jnp.float32)
    # otherparam exists in the module but is never used in forward().
    otherparam = jnp.zeros((5,), dtype=jnp.float32)  # unused

    # Small input consistent with torch.mm: x must be (10, N). Pick N = 8.
    x = jax.random.normal(key, (DIM, 8), dtype=jnp.float32)

    out = parameter_module_forward(params, x)
    out = jax.block_until_ready(out)

    ref = _reference_forward(params, x)
    assert out.shape == (DIM, 8)
    # Values grow to ~1e12 (ones-params), so compare relative to overall scale.
    # The (A+B)@x / chain-product fold changes FP association slightly.
    scale = jnp.max(jnp.abs(ref))
    assert jnp.max(jnp.abs(out - ref)) <= 1e-3 * scale, "mismatch vs reference"

    print("KERNEL_OK")
</pallas_src>

<mosaic_0001>
module attributes {stable_mosaic.version = 11 : i64} {
  func.func @_apply_kernel(%arg0: i32, %arg1: memref<10x10xf32, #tpu.memory_space<vmem>>, %arg2: memref<10x128xf32, #tpu.memory_space<vmem>>, %arg3: memref<10x128xf32, #tpu.memory_space<vmem>>) attributes {dimension_semantics = [#tpu.dimension_semantics<parallel>], iteration_bounds = array<i64: 1>, scalar_prefetch = 0 : i64, scratch_operands = 0 : i64, tpu.core_type = #tpu.core_type<tc>, window_params = [{pipeline_mode = #tpu.pipeline_mode<synchronous>, transform_indices = @transform_0, window_bounds = array<i64: 10, 10>}, {transform_indices = @transform_1, window_bounds = array<i64: 10, 128>}, {transform_indices = @transform_2, window_bounds = array<i64: 10, 128>}]} {
    %c0 = arith.constant 0 : index
    %c0_0 = arith.constant 0 : index
    %0 = vector.load %arg1[%c0, %c0_0] : memref<10x10xf32, #tpu.memory_space<vmem>>, vector<10x10xf32>
    %c0_1 = arith.constant 0 : index
    %c0_2 = arith.constant 0 : index
    %1 = vector.load %arg2[%c0_1, %c0_2] : memref<10x128xf32, #tpu.memory_space<vmem>>, vector<10x128xf32>
    %cst = arith.constant dense<0.000000e+00> : vector<10x128xf32>
    %2 = tpu.matmul %0, %1, %cst {dimension_numbers = #tpu.dot_dimension_numbers<[1], [0], [0], [1], [0, 0, 1, 1], [], []>} : vector<10x10xf32>, vector<10x128xf32>, vector<10x128xf32> -> vector<10x128xf32>
    %c0_3 = arith.constant 0 : index
    %c0_4 = arith.constant 0 : index
    %3 = vector.load %arg3[%c0_3, %c0_4] : memref<10x128xf32, #tpu.memory_space<vmem>>, vector<10x128xf32>
    tpu.vector_store %arg3[%c0_3, %c0_4], %2 {strides = array<i32>} : memref<10x128xf32, #tpu.memory_space<vmem>>, vector<10x128xf32>,
    return
  }
  func.func @transform_0(%arg0: i32) -> (i32, i32) {
    %c0_i32 = arith.constant 0 : i32
    %c0_i32_0 = arith.constant 0 : i32
    %c0_i32_1 = arith.constant 0 : i32
    return %c0_i32, %c0_i32_0 : i32, i32
  }
  func.func @transform_1(%arg0: i32) -> (i32, i32) {
    %c0_i32 = arith.constant 0 : i32
    %c0_i32_0 = arith.constant 0 : i32
    return %c0_i32, %arg0 : i32, i32
  }
  func.func @transform_2(%arg0: i32) -> (i32, i32) {
    %c0_i32 = arith.constant 0 : i32
    %c0_i32_0 = arith.constant 0 : i32
    return %c0_i32, %arg0 : i32, i32
  }
}

</mosaic_0001>

<llo_original>
// kernel: tpu_custom_call.1
$region0: #{tpu_custom_call.1}
  #allocation0 [shape = 'u32[]', space=smem, size = 0x4, offset = 0x4, fixed_abs, tag = 'smem constant byte address 0x4 - core index']
  #allocation1 [shape = 'u32[144,128]{1,0:T(1,128)}', space=vmem, size = 0x12000, scoped, tag = 'internal scratch']
  %s0 = inlined_call_operand.vmem [shape: f32[10,10], index: 0, kind: input, shape index: {}]
  %s1 = inlined_call_operand.vmem [shape: f32[10,8], index: 1, kind: input, shape index: {}]
  %s2 = inlined_call_operand.vmem [shape: f32[10,8], index: 2, kind: output, shape index: {}]
  %s3 = sld [smem:[#allocation0]]
  $region18: #{tpu_custom_call.1} parent=0
    _
  %s5 = ssub.s32 1, %s3
  %s6 = scalar_select 0, %s5, %s3
  // Predicated region
  $region2: #{tpu_custom_call.1} parent=0 // pred_check
    _
  $region3: #{tpu_custom_call.1} parent=0 // pred_check_branch
    %8 = sbr.rel (0) target = $region5
  $region4: #{tpu_custom_call.1} parent=0 // pred_region
    _
  $region5: #{tpu_custom_call.1} parent=0 // pred_fallthru
    _
  // Predicated region
  $region6: #{tpu_custom_call.1} parent=0 // pred_check
    _
  $region7: #{tpu_custom_call.1} parent=0 // pred_check_branch
    %10 = sbr.rel (0) target = $region9
  $region8: #{tpu_custom_call.1} parent=0 // pred_region
    _
  $region9: #{tpu_custom_call.1} parent=0 // pred_fallthru
    _
  %v11 = vld [vmem:[%s0] sm:$0xff]
  %v12 = vld [vmem:[%s0 + $0x8] sm:$0x3]
  %v13 = vld [vmem:[%s1] sm:$0xff]
  %v14 = vld [vmem:[%s1 + $0x8] sm:$0x3]
  %vm15 = vcmask 80896
  %v17 = vsel %vm15, %v11, 0
  %v20 = vsel %vm15, %v12, 0
  %vm22 = vcmask 1041408
  %v24 = vsel %vm22, %v14, 0
  %26 = vmatprep.subr.mxu0 0.0
  %27 = vmatpush1.msra.mxu0 %v13
  %28 = vmatprep.subr.mxu0 0.0
  %29 = vmatpush1.msra.mxu0 %v24
  %30 = vmatprep.subr.mxu0 0.0
  %31 = vmatpush1.msra.mxu0 0.0
  %32 = vmatprep.subr.mxu0 0.0
  %33 = vmatpush1.msra.mxu0 0.0
  %34 = vmatprep.subr.mxu0 0.0
  %35 = vmatpush1.msra.mxu0 0.0
  %36 = vmatprep.subr.mxu0 0.0
  %37 = vmatpush1.msra.mxu0 0.0
  %38 = vmatprep.subr.mxu0 0.0
  %39 = vmatpush1.msra.mxu0 0.0
  %40 = vmatprep.subr.mxu0 0.0
  %41 = vmatpush1.msra.mxu0 0.0
  %42 = vmatprep.subr.mxu0 0.0
  %43 = vmatpush1.msra.mxu0 0.0
  %44 = vmatprep.subr.mxu0 0.0
  %45 = vmatpush1.msra.mxu0 0.0
  %46 = vmatprep.subr.mxu0 0.0
  %47 = vmatpush1.msra.mxu0 0.0
  %48 = vmatprep.subr.mxu0 0.0
  %49 = vmatpush1.msra.mxu0 0.0
  %50 = vmatprep.subr.mxu0 0.0
  %51 = vmatpush1.msra.mxu0 0.0
  %52 = vmatprep.subr.mxu0 0.0
  %53 = vmatpush1.msra.mxu0 0.0
  %54 = vmatprep.subr.mxu0 0.0
  %55 = vmatpush1.msra.mxu0 0.0
  %56 = vmatprep.subr.mxu0 0.0
  %57 = vmatpush1.msra.mxu0 0.0
  %58 = vmatprep.subr.mxu0 0.0
  %59 = vmatpush1.msra.mxu0 0.0
  %60 = vmatprep.subr.mxu0 0.0
  %61 = vmatpush1.msra.mxu0 0.0
  %62 = vmatprep.subr.mxu0 0.0
  %63 = vmatpush1.msra.mxu0 0.0
  %64 = vmatprep.subr.mxu0 0.0
  %65 = vmatpush1.msra.mxu0 0.0
  %66 = vmatprep.subr.mxu0 0.0
  %67 = vmatpush1.msra.mxu0 0.0
  %68 = vmatprep.subr.mxu0 0.0
  %69 = vmatpush1.msra.mxu0 0.0
  %70 = vmatprep.subr.mxu0 0.0
  %71 = vmatpush1.msra.mxu0 0.0
  %72 = vmatprep.subr.mxu0 0.0
  %73 = vmatpush1.msra.mxu0 0.0
  %74 = vmatprep.subr.mxu0 0.0
  %75 = vmatpush1.msra.mxu0 0.0
  %76 = vmatprep.subr.mxu0 0.0
  %77 = vmatpush1.msra.mxu0 0.0
  %78 = vmatprep.subr.mxu0 0.0
  %79 = vmatpush1.msra.mxu0 0.0
  %80 = vmatprep.subr.mxu0 0.0
  %81 = vmatpush1.msra.mxu0 0.0
  %82 = vmatprep.subr.mxu0 0.0
  %83 = vmatpush1.msra.mxu0 0.0
  %84 = vmatprep.subr.mxu0 0.0
  %85 = vmatpush1.msra.mxu0 0.0
  %86 = vmatprep.subr.mxu0 0.0
  %87 = vmatpush1.msra.mxu0 0.0
  %88 = vmatprep.subr.mxu0 0.0
  %89 = vmatpush1.msra.mxu0 0.0
  %90 = vmatprep.mubr.f32.mxu0 0.0
  %91 = vmatmul.mubr.f32.gmra.mrb[0].mxu0 %v17
  %v92 = vpop.f32.mrb[0].mxu0
  %v93 = vadd.f32 0.0, %v92
  %v94 = vpop.f32.mrb[0].mxu0
  %95 = vmatprep.mubr.f32.mxu0 0.0
  %96 = vmatmul.mubr.f32.gmra.mrb[0].mxu0 %v20
  %v97 = vpop.f32.mrb[0].mxu0
  %v98 = vadd.f32 0.0, %v97
  %v99 = vpop.f32.mrb[0].mxu0
  %100 = vdwg.mxu0
  %101 = vst [vmem:[%s2] sm:$0xff] %v93
  %102 = vst [vmem:[%s2 + $0x8] sm:$0x3] %v98
  // Predicated region
  $region10: #{tpu_custom_call.1} parent=0 // pred_check
    _
  $region11: #{tpu_custom_call.1} parent=0 // pred_check_branch
    %104 = sbr.rel (0) target = $region13
  $region12: #{tpu_custom_call.1} parent=0 // pred_region
    _
  $region13: #{tpu_custom_call.1} parent=0 // pred_fallthru
    _
  // Predicated region
  $region14: #{tpu_custom_call.1} parent=0 // pred_check
    _
  $region15: #{tpu_custom_call.1} parent=0 // pred_check_branch
    %106 = sbr.rel (0) target = $region17
  $region16: #{tpu_custom_call.1} parent=0 // pred_region
    _
  $region17: #{tpu_custom_call.1} parent=0 // pred_fallthru
    _

</llo_original>
